<compile_context>
chip_gen: v7x
topology: tpu7x:2x2x1
jax: 0.10.0
libtpu: 0.0.40
codegen_flags: <defaults>
</compile_context>

<pallas_src>
import functools

import jax
import jax.numpy as jnp
from jax import lax
from jax.experimental import pallas as pl
from jax.experimental.pallas import tpu as pltpu


# ---------------------------------------------------------------------------
# Helpers
# ---------------------------------------------------------------------------
def _round_up(x, m):
    return ((x + m - 1) // m) * m


def _pick_head_group(d_model, d_k, max_lanes=512):
    """Lane width `c` of one attention head-group block.

    Must be a multiple of d_k, divide d_model, and be either a multiple of 128
    (lane-dense and tiling-legal over any last dim) or equal to d_model.
    """
    if d_model <= max_lanes or d_model % 128 != 0:
        return d_model
    step = d_k
    while step % 128 != 0:
        step += d_k                       # smallest multiple of d_k that is 128-aligned
    best = None
    cand = step
    while cand <= max_lanes:
        if d_model % cand == 0:
            best = cand
        cand += step
    return best if best is not None else d_model


# ---------------------------------------------------------------------------
# One-time parameter preparation (call ONCE, outside the jitted step)
# ---------------------------------------------------------------------------
def prepare_mha_params(raw_params, *, h, d_model, fuse_qkv=True):
    """Folds 1/sqrt(d_k) into the Q projection and pre-concatenates the fused
    QKV weight/bias so the forward pass never re-materializes 3*D^2 weights."""
    d_k = d_model // h
    scale = 1.0 / (d_k ** 0.5)
    p = dict(raw_params)
    p["w_q"] = raw_params["w_q"] * scale
    p["b_q"] = raw_params["b_q"] * scale
    if fuse_qkv:
        p["w_qkv"] = jnp.concatenate([p["w_q"], p["w_k"], p["w_v"]], axis=1)
        p["b_qkv"] = jnp.concatenate([p["b_q"], p["b_k"], p["b_v"]], axis=0)
    return p


# ---------------------------------------------------------------------------
# Tiled linear kernel:  y = x @ W + b
# ---------------------------------------------------------------------------
def linear_kernel(x_ref, w_ref, b_ref, o_ref, acc_ref):
    k = pl.program_id(2)

    @pl.when(k == 0)
    def _():
        acc_ref[...] = jnp.zeros(acc_ref.shape, acc_ref.dtype)

    acc_ref[...] += jnp.dot(x_ref[...], w_ref[...],
                            preferred_element_type=jnp.float32)

    @pl.when(k == pl.num_programs(2) - 1)
    def _():
        o_ref[...] = (acc_ref[...] + b_ref[...].astype(jnp.float32)).astype(o_ref.dtype)


def linear(x2d, w, b, *, out_dtype=None):
    """(N, D_in) @ (D_in, D_out) + (D_out,) -> (N, D_out), tiled + pipelined.

    Non-divisible shapes are zero-padded up to the tile grid (K padding is
    mathematically inert; padded rows/columns are sliced away) instead of
    silently falling back to a single full-dimension tile.
    """
    n, d_in = x2d.shape
    d_out = w.shape[1]
    if out_dtype is None:
        out_dtype = x2d.dtype

    # Tiles up to 512: f32 working set (2 inputs + output, double buffered,
    # + f32 accumulator) is ~9 MiB -- inside even v5e's 16 MiB scoped default.
    tm = min(512, _round_up(n, 8))
    tk = min(512, _round_up(d_in, 128))
    tn = min(512, _round_up(d_out, 128))
    n_p = _round_up(n, tm)
    k_p = _round_up(d_in, tk)
    o_p = _round_up(d_out, tn)

    # v7x megacore: try to keep >=2 independent (M, N) work units.
    while (n_p // tm) * (o_p // tn) < 2 and tm % 16 == 0 and tm > 8:
        tm //= 2

    if (n_p, k_p) != (n, d_in):
        x2d = jnp.pad(x2d, ((0, n_p - n), (0, k_p - d_in)))
    if (k_p, o_p) != (d_in, d_out):
        w = jnp.pad(w, ((0, k_p - d_in), (0, o_p - d_out)))
    if o_p != d_out:
        b = jnp.pad(b, (0, o_p - d_out))

    grid = (n_p // tm, o_p // tn, k_p // tk)
    out = pl.pallas_call(
        linear_kernel,
        out_shape=jax.ShapeDtypeStruct((n_p, o_p), out_dtype),
        grid_spec=pltpu.PrefetchScalarGridSpec(
            num_scalar_prefetch=0,
            grid=grid,
            in_specs=[
                pl.BlockSpec((tm, tk), lambda i, j, k: (i, k)),
                pl.BlockSpec((tk, tn), lambda i, j, k: (k, j)),
                pl.BlockSpec((1, tn), lambda i, j, k: (0, j)),
            ],
            out_specs=pl.BlockSpec((tm, tn), lambda i, j, k: (i, j)),
            scratch_shapes=[pltpu.VMEM((tm, tn), jnp.float32)]),
        compiler_params=pltpu.CompilerParams(
            dimension_semantics=("parallel", "parallel", "arbitrary")),
    )(x2d, w, b.reshape(1, o_p))

    if (n_p, o_p) != (n, d_out):
        out = out[:n, :d_out]
    return out


# ---------------------------------------------------------------------------
# Flash-style attention kernel over the BSD layout
# ---------------------------------------------------------------------------
def mha_flash_kernel(q_ref, k_ref, v_ref, o_ref, m_scr, l_scr, acc_scr, o_scr,
                     *, d_k, hc, kv_len, tkv, needs_mask, compute_dtype):
    # q_ref: (1, tq, c), k_ref/v_ref: (1, tkv, c), o_ref: (1, tq, c), c = hc*d_k.
    ki = pl.program_id(3)

    @pl.when(ki == 0)
    def _():
        m_scr[...] = jnp.full(m_scr.shape, -jnp.inf, m_scr.dtype)
        l_scr[...] = jnp.zeros(l_scr.shape, l_scr.dtype)
        acc_scr[...] = jnp.zeros(acc_scr.shape, acc_scr.dtype)

    if needs_mask:
        # Mask padded keys (S was padded up to a tile multiple).  Static gate:
        # this code only exists when padding is present.
        col = lax.broadcasted_iota(jnp.int32, (q_ref.shape[1], k_ref.shape[1]), 1)
        valid = (ki * tkv + col) < kv_len

    # Static unroll over the heads packed into this lane group.
    for hh in range(hc):
        lo = hh * d_k
        # 1/sqrt(d_k) is pre-folded into the Q projection -> no per-step scale.
        q_h = q_ref[0, :, lo:lo + d_k].astype(compute_dtype)     # (tq, d_k)
        k_h = k_ref[0, :, lo:lo + d_k].astype(compute_dtype)     # (tkv, d_k)
        v_h = v_ref[0, :, lo:lo + d_k].astype(compute_dtype)     # (tkv, d_k)

        # QK^T contracting the last dims directly (no materialized transpose);
        # bf16 MXU matmul with f32 accumulation.
        scores = lax.dot_general(
            q_h, k_h, dimension_numbers=(((1,), (1,)), ((), ())),
            preferred_element_type=jnp.float32)                  # (tq, tkv) f32

        if needs_mask:
            scores = jnp.where(valid, scores, -jnp.inf)

        m_prev = m_scr[hh]                                       # (tq, 1) f32
        m_new = jnp.maximum(m_prev, jnp.max(scores, axis=-1, keepdims=True))
        alpha = jnp.exp(m_prev - m_new)
        # exp on the EUP in bf16 (v6e/v7x); p is already in the PV matmul dtype.
        p = jnp.exp((scores - m_new).astype(compute_dtype))      # (tq, tkv)

        l_scr[hh] = alpha * l_scr[hh] + jnp.sum(
            p.astype(jnp.float32), axis=-1, keepdims=True)
        acc_scr[hh] = alpha * acc_scr[hh] + jnp.dot(
            p, v_h, preferred_element_type=jnp.float32)
        m_scr[hh] = m_new

    @pl.when(ki == pl.num_programs(3) - 1)
    def _():
        if hc == 1:
            inv_l = pl.reciprocal(l_scr[0], approx=False)        # exact, once/tile
            o_ref[0] = (acc_scr[0] * inv_l).astype(o_ref.dtype)
        else:
            # Assemble the full (tq, c) head-group tile in VMEM scratch, then
            # emit ONE lane-dense store (instead of hc masked d_k-wide stores).
            for hh in range(hc):
                lo = hh * d_k
                inv_l = pl.reciprocal(l_scr[hh], approx=False)   # exact, once/tile
                o_scr[:, lo:lo + d_k] = acc_scr[hh] * inv_l
            o_ref[0] = o_scr[...].astype(o_ref.dtype)


def flash_mha(q_arr, k_arr, v_arr, *, d_model, n_heads, group_lanes,
              block_offsets=(0, 0, 0), seq_tile=256,
              out_dtype=None, compute_dtype=None):
    """Scaled dot-product attention over (B, S, *) arrays; returns (B, Sq, d_model).

    `block_offsets` are last-axis block offsets (in units of `group_lanes`) so a
    fused (B, S, 3*d_model) QKV slab can be consumed directly without slicing.
    Sequence lengths that do not divide the tile are padded; padded keys are
    masked inside the kernel.
    """
    bsz, s_q, _ = q_arr.shape
    s_kv = k_arr.shape[1]
    d_k = d_model // n_heads
    c = group_lanes
    hc = c // d_k
    n_groups = d_model // c
    if out_dtype is None:
        out_dtype = q_arr.dtype
    if compute_dtype is None:
        compute_dtype = q_arr.dtype
    q_off, k_off, v_off = block_offsets

    # Sequence tiles: multiples of 8, up to `seq_tile` (default 256 to fill the
    # 2x256 MXU on v6e/v7x; K+V double-buffered at (1,256,512) bf16 is ~1 MiB).
    tq = min(seq_tile, _round_up(s_q, 8))
    tkv = min(seq_tile, _round_up(s_kv, 8))
    s_q_pad = _round_up(s_q, tq)
    s_kv_pad = _round_up(s_kv, tkv)

    # v7x megacore: keep >=2 independent units of work on the parallel axes.
    while bsz * n_groups * (s_q_pad // tq) < 2 and tq % 16 == 0 and tq > 8:
        tq //= 2

    shared = (q_arr is k_arr) and (q_arr is v_arr)
    if shared:
        if s_q_pad != s_q:
            q_arr = k_arr = v_arr = jnp.pad(
                q_arr, ((0, 0), (0, s_q_pad - s_q), (0, 0)))
    else:
        if s_q_pad != s_q:
            q_arr = jnp.pad(q_arr, ((0, 0), (0, s_q_pad - s_q), (0, 0)))
        if s_kv_pad != s_kv:
            k_arr = jnp.pad(k_arr, ((0, 0), (0, s_kv_pad - s_kv), (0, 0)))
            v_arr = jnp.pad(v_arr, ((0, 0), (0, s_kv_pad - s_kv), (0, 0)))
    needs_mask = s_kv_pad != s_kv

    grid = (bsz, n_groups, s_q_pad // tq, s_kv_pad // tkv)

    q_spec = pl.BlockSpec((1, tq, c), lambda b, g, qi, ki: (b, qi, g + q_off))
    k_spec = pl.BlockSpec((1, tkv, c), lambda b, g, qi, ki: (b, ki, g + k_off))
    v_spec = pl.BlockSpec((1, tkv, c), lambda b, g, qi, ki: (b, ki, g + v_off))
    o_spec = pl.BlockSpec((1, tq, c), lambda b, g, qi, ki: (b, qi, g))

    kernel = functools.partial(
        mha_flash_kernel, d_k=d_k, hc=hc, kv_len=s_kv, tkv=tkv,
        needs_mask=needs_mask, compute_dtype=compute_dtype)

    out = pl.pallas_call(
        kernel,
        out_shape=jax.ShapeDtypeStruct((bsz, s_q_pad, d_model), out_dtype),
        grid_spec=pltpu.PrefetchScalarGridSpec(
            num_scalar_prefetch=0,
            grid=grid,
            in_specs=[q_spec, k_spec, v_spec],
            out_specs=o_spec,
            scratch_shapes=[pltpu.VMEM((hc, tq, 1), jnp.float32),    # running max
                            pltpu.VMEM((hc, tq, 1), jnp.float32),    # running denom
                            pltpu.VMEM((hc, tq, d_k), jnp.float32),  # running acc
                            pltpu.VMEM((tq, c), jnp.float32)]),      # output tile
        compiler_params=pltpu.CompilerParams(
            dimension_semantics=("parallel", "parallel", "parallel", "arbitrary")),
    )(q_arr, k_arr, v_arr)

    if s_q_pad != s_q:
        out = out[:, :s_q, :]
    return out


# ---------------------------------------------------------------------------
# MultiHeadAttention forward (eval mode, mask=None)
# ---------------------------------------------------------------------------
def multi_head_attention(params, query, key, value, *, h,
                         attn_dtype=jnp.bfloat16, seq_tile=256,
                         self_attention=None):
    """
    params: output of prepare_mha_params (Q scale folded, optional fused QKV).
            Weights are stored already transposed: (d_in, d_out), y = x @ W + b.
    query: (B, Sq, d_model); key/value: (B, Skv, d_model).
    attn_dtype: dtype for Q/K/V intermediates and attention matmuls (bf16 by
                default; softmax stats and accumulators stay f32).
    self_attention: force the fused-QKV path (identity check used when None).
    """
    bsz, s_q, d_model = query.shape
    assert d_model % h == 0
    d_k = d_model // h

    c = _pick_head_group(d_model, d_k)        # lanes (= hc heads) per attention program
    n_groups = d_model // c

    if self_attention is None:
        self_attention = (query is key) and (query is value)
    fused = self_attention and ("w_qkv" in params)

    if fused:
        # Fused QKV projection: the activation is streamed from HBM once, and
        # the projections are emitted in bf16 (halves the attention K/V traffic).
        qkv = linear(query.reshape(bsz * s_q, d_model),
                     params["w_qkv"], params["b_qkv"], out_dtype=attn_dtype)
        if c % 128 == 0:
            # Feed the fused (B, S, 3D) slab straight into attention; the
            # BlockSpec index_maps select the Q/K/V column ranges (zero copies).
            qkv_bsd = qkv.reshape(bsz, s_q, 3 * d_model)
            q_arr = k_arr = v_arr = qkv_bsd
            offsets = (0, n_groups, 2 * n_groups)
        else:
            # Small d_model: a c-wide block over a (B,S,3D) array would break
            # the (8,128)/full-dim tiling rule, so split into (B,S,D) arrays.
            q_arr = qkv[:, :d_model].reshape(bsz, s_q, d_model)
            k_arr = qkv[:, d_model:2 * d_model].reshape(bsz, s_q, d_model)
            v_arr = qkv[:, 2 * d_model:].reshape(bsz, s_q, d_model)
            offsets = (0, 0, 0)
    else:
        def proj(x, wn, bn):
            b_, s_, _ = x.shape
            return linear(x.reshape(b_ * s_, d_model), params[wn], params[bn],
                          out_dtype=attn_dtype).reshape(b_, s_, d_model)
        q_arr = proj(query, "w_q", "b_q")
        k_arr = proj(key, "w_k", "b_k")
        v_arr = proj(value, "w_v", "b_v")
        offsets = (0, 0, 0)

    # Attention writes its result straight into a lane-dense (B, S, D) slab --
    # no (B, H, S, d_k) transposes on either side.
    ctx = flash_mha(q_arr, k_arr, v_arr, d_model=d_model, n_heads=h,
                    group_lanes=c, block_offsets=offsets, seq_tile=seq_tile,
                    out_dtype=query.dtype, compute_dtype=attn_dtype)

    out = linear(ctx.reshape(bsz * s_q, d_model), params["w_o"], params["b_o"],
                 out_dtype=query.dtype)
    return out.reshape(bsz, s_q, d_model)


# ---------------------------------------------------------------------------
# Pure-JAX reference (correctness check) -- takes the RAW (unscaled) params
# ---------------------------------------------------------------------------
def reference_mha(params, query, key, value, *, h):
    bsz, s_q, d_model = query.shape
    d_k = d_model // h

    def proj(x, w, b):
        s = x.shape[1]
        y = x.reshape(bsz * s, d_model) @ w + b
        return y.reshape(bsz, s, h, d_k).transpose(0, 2, 1, 3)

    q = proj(query, params["w_q"], params["b_q"])
    k = proj(key, params["w_k"], params["b_k"])
    v = proj(value, params["w_v"], params["b_v"])
    scores = jnp.einsum("bhqd,bhkd->bhqk", q, k) / (d_k ** 0.5)
    p = jax.nn.softmax(scores, axis=-1)
    x = jnp.einsum("bhqk,bhkd->bhqd", p, v)
    x = x.transpose(0, 2, 1, 3).reshape(bsz * s_q, d_model)
    return (x @ params["w_o"] + params["b_o"]).reshape(bsz, s_q, d_model)


if __name__ == "__main__":
    def init_linear(kw, kb, d_in, d_out):
        bound = 1.0 / (d_in ** 0.5)
        w = jax.random.uniform(kw, (d_in, d_out), jnp.float32, -bound, bound)
        b = jax.random.uniform(kb, (d_out,), jnp.float32, -bound, bound)
        return w, b

    def make_params(key, d_model):
        ks = jax.random.split(key, 8)
        w_q, b_q = init_linear(ks[0], ks[1], d_model, d_model)
        w_k, b_k = init_linear(ks[2], ks[3], d_model, d_model)
        w_v, b_v = init_linear(ks[4], ks[5], d_model, d_model)
        w_o, b_o = init_linear(ks[6], ks[7], d_model, d_model)
        return dict(w_q=w_q, b_q=b_q, w_k=w_k, b_k=b_k,
                    w_v=w_v, b_v=b_v, w_o=w_o, b_o=b_o)

    # Tolerance reflects bf16 Q/K/V intermediates, bf16 exp and bf16 matmuls
    # (accumulation and softmax stats stay f32; reciprocal is exact).
    TOL = dict(rtol=2e-2, atol=2e-2)

    root = jax.random.PRNGKey(0)
    kp_a, kp_b, kx, kq, kk, kv, ky = jax.random.split(root, 7)

    # Case 1: self-attention, small d_model (split-QKV path); seq_tile=8 forces
    # multiple online-softmax KV steps.  B=2, S=16, D=32, H=4 (d_k=8).
    B, S, D, H = 2, 16, 32, 4
    raw_a = make_params(kp_a, D)
    prep_a = prepare_mha_params(raw_a, h=H, d_model=D)
    x = jax.random.normal(kx, (B, S, D), jnp.float32)
    out1 = jax.block_until_ready(
        multi_head_attention(prep_a, x, x, x, h=H, seq_tile=8))
    ref1 = reference_mha(raw_a, x, x, x, h=H)
    assert out1.shape == (B, S, D)
    assert jnp.allclose(out1, ref1, **TOL), "self-attention (small d_model) mismatch"

    # Case 2: cross-attention with distinct Q/K/V and a different KV length.
    S_KV = 24
    q_in = jax.random.normal(kq, (B, S, D), jnp.float32)
    k_in = jax.random.normal(kk, (B, S_KV, D), jnp.float32)
    v_in = jax.random.normal(kv, (B, S_KV, D), jnp.float32)
    out2 = jax.block_until_ready(
        multi_head_attention(prep_a, q_in, k_in, v_in, h=H, seq_tile=8))
    ref2 = reference_mha(raw_a, q_in, k_in, v_in, h=H)
    assert out2.shape == (B, S, D)
    assert jnp.allclose(out2, ref2, **TOL), "cross-attention mismatch"

    # Case 3: self-attention with d_model=128 (fused (B,S,3D) slab fed straight
    # to attention), d_k=64 head-group slicing, and a non-multiple-of-8 seq
    # length exercising S padding + in-kernel key masking.
    B3, S3, D3, H3 = 2, 20, 128, 2
    raw_b = make_params(kp_b, D3)
    prep_b = prepare_mha_params(raw_b, h=H3, d_model=D3)
    y = jax.random.normal(ky, (B3, S3, D3), jnp.float32)
    out3 = jax.block_until_ready(
        multi_head_attention(prep_b, y, y, y, h=H3, seq_tile=8))
    ref3 = reference_mha(raw_b, y, y, y, h=H3)
    assert out3.shape == (B3, S3, D3)
    assert jnp.allclose(out3, ref3, **TOL), "fused-slab / masked-padding mismatch"

    print("KERNEL_OK")
</pallas_src>

<mosaic_0001>
module attributes {stable_mosaic.version = 11 : i64} {
  func.func @linear_kernel(%arg0: i32, %arg1: i32, %arg2: i32, %arg3: memref<16x128xf32, #tpu.memory_space<vmem>>, %arg4: memref<128x128xf32, #tpu.memory_space<vmem>>, %arg5: memref<1x128xf32, #tpu.memory_space<vmem>>, %arg6: memref<16x128xbf16, #tpu.memory_space<vmem>>, %arg7: memref<16x128xf32, #tpu.memory_space<vmem>>) attributes {dimension_semantics = [#tpu.dimension_semantics<parallel>, #tpu.dimension_semantics<parallel>, #tpu.dimension_semantics<arbitrary>], iteration_bounds = array<i64: 2, 1, 1>, scalar_prefetch = 0 : i64, scratch_operands = 1 : i64, tpu.core_type = #tpu.core_type<tc>, window_params = [{transform_indices = @transform_0, window_bounds = array<i64: 16, 128>}, {transform_indices = @transform_1, window_bounds = array<i64: 128, 128>}, {transform_indices = @transform_2, window_bounds = array<i64: 1, 128>}, {transform_indices = @transform_3, window_bounds = array<i64: 16, 128>}]} {
    %c0_i32 = arith.constant 0 : i32
    %0 = arith.cmpi eq, %arg2, %c0_i32 : i32
    %1 = arith.extui %0 : i1 to i32
    %c0_i32_0 = arith.constant 0 : i32
    %2 = arith.cmpi ne, %1, %c0_i32_0 : i32
    scf.if %2 {
      %cst_10 = arith.constant 0.000000e+00 : f32
      %12 = vector.broadcast %cst_10 : f32 to vector<16x128xf32>
      %c0_11 = arith.constant 0 : index
      %c0_12 = arith.constant 0 : index
      %13 = vector.load %arg7[%c0_11, %c0_12] : memref<16x128xf32, #tpu.memory_space<vmem>>, vector<16x128xf32>
      tpu.vector_store %arg7[%c0_11, %c0_12], %12 {strides = array<i32>} : memref<16x128xf32, #tpu.memory_space<vmem>>, vector<16x128xf32>,
    } else {
    }
    %c0 = arith.constant 0 : index
    %c0_1 = arith.constant 0 : index
    %3 = vector.load %arg7[%c0, %c0_1] : memref<16x128xf32, #tpu.memory_space<vmem>>, vector<16x128xf32>
    %c0_2 = arith.constant 0 : index
    %c0_3 = arith.constant 0 : index
    %4 = vector.load %arg3[%c0_2, %c0_3] : memref<16x128xf32, #tpu.memory_space<vmem>>, vector<16x128xf32>
    %c0_4 = arith.constant 0 : index
    %c0_5 = arith.constant 0 : index
    %5 = vector.load %arg4[%c0_4, %c0_5] : memref<128x128xf32, #tpu.memory_space<vmem>>, vector<128x128xf32>
    %cst = arith.constant dense<0.000000e+00> : vector<16x128xf32>
    %6 = tpu.matmul %4, %5, %cst {dimension_numbers = #tpu.dot_dimension_numbers<[1], [0], [0], [1], [0, 0, 1, 1], [], []>} : vector<16x128xf32>, vector<128x128xf32>, vector<16x128xf32> -> vector<16x128xf32>
    %7 = arith.addf %3, %6 : vector<16x128xf32>
    %c0_6 = arith.constant 0 : index
    %c0_7 = arith.constant 0 : index
    %8 = vector.load %arg7[%c0_6, %c0_7] : memref<16x128xf32, #tpu.memory_space<vmem>>, vector<16x128xf32>
    tpu.vector_store %arg7[%c0_6, %c0_7], %7 {strides = array<i32>} : memref<16x128xf32, #tpu.memory_space<vmem>>, vector<16x128xf32>,
    %c0_i32_8 = arith.constant 0 : i32
    %9 = arith.cmpi eq, %arg2, %c0_i32_8 : i32
    %10 = arith.extui %9 : i1 to i32
    %c0_i32_9 = arith.constant 0 : i32
    %11 = arith.cmpi ne, %10, %c0_i32_9 : i32
    scf.if %11 {
      %c0_10 = arith.constant 0 : index
      %c0_11 = arith.constant 0 : index
      %12 = vector.load %arg7[%c0_10, %c0_11] : memref<16x128xf32, #tpu.memory_space<vmem>>, vector<16x128xf32>
      %c0_12 = arith.constant 0 : index
      %c0_13 = arith.constant 0 : index
      %13 = vector.load %arg5[%c0_12, %c0_13] : memref<1x128xf32, #tpu.memory_space<vmem>>, vector<1x128xf32>
      %14 = vector.broadcast %13 : vector<1x128xf32> to vector<16x128xf32>
      %15 = arith.addf %12, %14 : vector<16x128xf32>
      %16 = arith.truncf %15 : vector<16x128xf32> to vector<16x128xbf16>
      %c0_14 = arith.constant 0 : index
      %c0_15 = arith.constant 0 : index
      %17 = vector.load %arg6[%c0_14, %c0_15] : memref<16x128xbf16, #tpu.memory_space<vmem>>, vector<16x128xbf16>
      tpu.vector_store %arg6[%c0_14, %c0_15], %16 {strides = array<i32>} : memref<16x128xbf16, #tpu.memory_space<vmem>>, vector<16x128xbf16>,
    } else {
    }
    return
  }
  func.func @transform_0(%arg0: i32, %arg1: i32, %arg2: i32) -> (i32, i32) {
    %c0_i32 = arith.constant 0 : i32
    return %arg0, %arg2 : i32, i32
  }
  func.func @transform_1(%arg0: i32, %arg1: i32, %arg2: i32) -> (i32, i32) {
    %c0_i32 = arith.constant 0 : i32
    return %arg2, %arg1 : i32, i32
  }
  func.func @transform_2(%arg0: i32, %arg1: i32, %arg2: i32) -> (i32, i32) {
    %c0_i32 = arith.constant 0 : i32
    %c0_i32_0 = arith.constant 0 : i32
    return %c0_i32, %arg1 : i32, i32
  }
  func.func @transform_3(%arg0: i32, %arg1: i32, %arg2: i32) -> (i32, i32) {
    %c0_i32 = arith.constant 0 : i32
    return %arg0, %arg1 : i32, i32
  }
}

</mosaic_0001>

<llo_original>
// kernel: tpu_custom_call.1
$region0: #{tpu_custom_call.1}
  #allocation0 [shape = 'u32[]', space=smem, size = 0x4, offset = 0x4, fixed_abs, tag = 'smem constant byte address 0x4 - core index']
  #allocation1 [shape = 'u32[144,128]{1,0:T(1,128)}', space=vmem, size = 0x12000, scoped, tag = 'internal scratch']
  #allocation2 [shape = 'f32[16,128]{1,0:T(8,128)}', space=vmem, size = 0x2000, scoped, tag = 'scratch operand']
  %s0 = inlined_call_operand.hbm [shape: f32[32,128], index: 0, kind: input, shape index: {}]
  %s1 = inlined_call_operand.hbm [shape: f32[128,128], index: 1, kind: input, shape index: {}]
  %s2 = inlined_call_operand.vmem [shape: f32[1,128], index: 2, kind: input, shape index: {}]
  %s3 = inlined_call_operand.hbm [shape: bf16[32,128], index: 3, kind: output, shape index: {}]
  %s4 = sld [smem:[#allocation0]]
  $region61: #{tpu_custom_call.1} parent=0
    _
  %s6 = ssub.s32 1, %s4
  %s7 = scalar_select 0, %s6, %s4
  $region1: #{tpu_custom_call.1} parent=0
    #allocation3 [shape = 'u8[16384]{0}', space=vmem, size = 0x4000, scoped, tag = 'input window, operand 0']
    #allocation4 [shape = 's32[2]{0}', space=sflag, size = 0x8, scoped, tag = 'scoped memory for tpu_custom_call.1']
    #allocation5 [shape = 's32[2]{0}', space=sflag, size = 0x8, scoped, tag = 'scoped memory for tpu_custom_call.1']
    #allocation6 [shape = 'u8[65536]{0}', space=vmem, size = 0x10000, scoped, tag = 'input window, operand 1, single buffered']
    #allocation7 [shape = 's32[1]{0}', space=sflag, size = 0x4, scoped, tag = 'scoped memory for tpu_custom_call.1']
    #allocation8 [shape = 'u8[8192]{0}', space=vmem, size = 0x2000, scoped, tag = 'output window, operand 0']
    %8 = vsyncpa [#allocation4], 0
    %s9 = scalar_lea.sflag [#allocation4], 1
    %10 = vsyncpa %s9, 0
    %11 = vsyncpa [#allocation7], 0
    %12 = vsyncpa [#allocation5], 0
    %s13 = scalar_lea.sflag [#allocation5], 1
    %14 = vsyncpa %s13, 0
    loop: start=0, step=1, limit=4
    $region2: #{tpu_custom_call.1} parent=1 // loop_pre_header
      _
    $region3: #{tpu_custom_call.1} parent=1 // loop_header
      %s16 = sphi 0, %s20
      %p17 = scmp.ge.s32.totalorder %s16, 4
      %s23 = sphi 0, %s42
      %s24 = sphi 0, %s38
      %s25 = sphi 0, %s34
      %s26 = sphi 0, %s23
      %s27 = sphi 0, %s24
      %s28 = sphi 0, %s25
      %s29 = sphi 0, %s26
      %s30 = sphi 0, %s27
      %s31 = sphi 0, %s28
      %s47 = sphi 0, %s49
      %s50 = sphi 0, %s47
      %s51 = sphi 0, %s50
      %s67 = sphi 0, %s51
      %s75 = sphi 0, %s77
      %s78 = sphi 0, %s75
      %s79 = sphi 0, %s78
      %s95 = sphi 0, %s79
      %s101 = sphi 0, %s103
      %s104 = sphi 0, %s101
      %s105 = sphi 0, %s104
      %s121 = sphi 0, %s105
      %s129 = sphi 0, %s131
      %s132 = sphi 0, %s129
      %s133 = sphi 0, %s132
      %s149 = sphi 0, %s133
    $region4: #{tpu_custom_call.1} parent=1 // loop_header_branch
      %19 = sbr.rel (%p17) target = $region8
    $region5: #{tpu_custom_call.1} parent=1 // loop_body
      %s21 = ssub.s32 %s16, 1
      %s22 = ssub.s32 %s16, 2
      %s32 = sadd.s32 1, %s25
      %p33 = scmp.ge.s32.totalorder %s32, 1
      %s34 = scalar_select %p33, 0, %s32
      %s35 = sadd.s32 1, %s24
      %s36 = scalar_select %p33, %s35, %s24
      %p37 = scmp.ge.s32.totalorder %s36, 1
      %s38 = scalar_select %p37, 0, %s36
      %s39 = sadd.s32 1, %s23
      %s40 = scalar_select %p37, %s39, %s23
      %p41 = scmp.ge.s32.totalorder %s40, 2
      %s42 = scalar_select %p41, 0, %s40
      %s43 = ssub.s32 %s23, %s42
      %s44 = ssub.s32 %s25, %s34
      %s45 = sor.u32 %s43, %s44
      %p46 = scmp.eq.s32.totalorder %s45, 0
      %s48 = sadd.s32 %s47, 1
      %s49 = scalar_select %p46, %s47, %s48
      %p52 = pneg %p46
      %p53 = scmp.eq.s32.totalorder %s16, 1
      %p54 = por %p52, %p53
      %p55 = scmp.ne.s32.totalorder %s47, %s50
      %p56 = scmp.eq.s32.totalorder %s16, 0
      %p57 = por %p55, %p56
      %p58 = scmp.ne.s32.totalorder %s47, %s50
      %p59 = scmp.eq.s32.totalorder %s21, 1
      %p60 = por %p58, %p59
      %p61 = scmp.ne.s32.totalorder %s50, %s51
      %p62 = scmp.eq.s32.totalorder %s21, 0
      %p63 = por %p61, %p62
      %p64 = scmp.ne.s32.totalorder %s50, %s51
      %p65 = scmp.eq.s32.totalorder %s22, 1
      %p66 = por %p64, %p65
      %p68 = scmp.ne.s32.totalorder %s51, %s67
      %p69 = scmp.eq.s32.totalorder %s22, 0
      %p70 = por %p68, %p69
      %s71 = ssub.s32 %s25, %s34
      %s72 = ssub.s32 %s24, %s38
      %s73 = sor.u32 %s71, %s72
      %p74 = scmp.eq.s32.totalorder %s73, 0
      %s76 = sadd.s32 %s75, 1
      %s77 = scalar_select %p74, %s75, %s76
      %p80 = pneg %p74
      %p81 = scmp.eq.s32.totalorder %s16, 1
      %p82 = por %p80, %p81
      %p83 = scmp.ne.s32.totalorder %s75, %s78
      %p84 = scmp.eq.s32.totalorder %s16, 0
      %p85 = por %p83, %p84
      %p86 = scmp.ne.s32.totalorder %s75, %s78
      %p87 = scmp.eq.s32.totalorder %s21, 1
      %p88 = por %p86, %p87
      %p89 = scmp.ne.s32.totalorder %s78, %s79
      %p90 = scmp.eq.s32.totalorder %s21, 0
      %p91 = por %p89, %p90
      %p92 = scmp.ne.s32.totalorder %s78, %s79
      %p93 = scmp.eq.s32.totalorder %s22, 1
      %p94 = por %p92, %p93
      %p96 = scmp.ne.s32.totalorder %s79, %s95
      %p97 = scmp.eq.s32.totalorder %s22, 0
      %p98 = por %p96, %p97
      %s99 = ssub.s32 %s24, %s38
      %p100 = scmp.eq.s32.totalorder %s99, 0
      %s102 = sadd.s32 %s101, 1
      %s103 = scalar_select %p100, %s101, %s102
      %p106 = pneg %p100
      %p107 = scmp.eq.s32.totalorder %s16, 1
      %p108 = por %p106, %p107
      %p109 = scmp.ne.s32.totalorder %s101, %s104
      %p110 = scmp.eq.s32.totalorder %s16, 0
      %p111 = por %p109, %p110
      %p112 = scmp.ne.s32.totalorder %s101, %s104
      %p113 = scmp.eq.s32.totalorder %s21, 1
      %p114 = por %p112, %p113
      %p115 = scmp.ne.s32.totalorder %s104, %s105
      %p116 = scmp.eq.s32.totalorder %s21, 0
      %p117 = por %p115, %p116
      %p118 = scmp.ne.s32.totalorder %s104, %s105
      %p119 = scmp.eq.s32.totalorder %s22, 1
      %p120 = por %p118, %p119
      %p122 = scmp.ne.s32.totalorder %s105, %s121
      %p123 = scmp.eq.s32.totalorder %s22, 0
      %p124 = por %p122, %p123
      %s125 = ssub.s32 %s23, %s42
      %s126 = ssub.s32 %s24, %s38
      %s127 = sor.u32 %s125, %s126
      %p128 = scmp.eq.s32.totalorder %s127, 0
      %s130 = sadd.s32 %s129, 1
      %s131 = scalar_select %p128, %s129, %s130
      %p134 = pneg %p128
      %p135 = scmp.eq.s32.totalorder %s16, 1
      %p136 = por %p134, %p135
      %p137 = scmp.ne.s32.totalorder %s129, %s132
      %p138 = scmp.eq.s32.totalorder %s16, 0
      %p139 = por %p137, %p138
      %p140 = scmp.ne.s32.totalorder %s129, %s132
      %p141 = scmp.eq.s32.totalorder %s21, 1
      %p142 = por %p140, %p141
      %p143 = scmp.ne.s32.totalorder %s132, %s133
      %p144 = scmp.eq.s32.totalorder %s21, 0
      %p145 = por %p143, %p144
      %p146 = scmp.ne.s32.totalorder %s132, %s133
      %p147 = scmp.eq.s32.totalorder %s22, 1
      %p148 = por %p146, %p147
      %p150 = scmp.ne.s32.totalorder %s133, %s149
      %p151 = scmp.eq.s32.totalorder %s22, 0
      %p152 = por %p150, %p151
      %p153 = scmp.le.s32.totalorder 1, %s16
      %p154 = scmp.lt.s32.totalorder %s16, 3
      %p155 = pnand %p153, %p154
      %p156 = pneg %p155
      // Predicated region
      $region9: #{tpu_custom_call.1} parent=5 // pred_check
        _
      $region10: #{tpu_custom_call.1} parent=5 // pred_check_branch
        %158 = sbr.rel (%p155) target = $region12
      $region11: #{tpu_custom_call.1} parent=5 // pred_region
        %s159 = ssub.s32 %s16, 1
        // Predicated region
        $region13: #{tpu_custom_call.1} parent=11 // pred_check
          %p160 = pneg %p91
        $region14: #{tpu_custom_call.1} parent=11 // pred_check_branch
          %162 = sbr.rel (%p160) target = $region16
        $region15: #{tpu_custom_call.1} parent=11 // pred_region
          %s163 = smul.u32 16, %s28
          %s165 = ssub.s32 2048, 2048
          %166 = vsyncadd [#allocation7], %s165
          %s167 = sadd.s32 %s27, %s163
          %s168 = smul.addr %s167, 128
          %s169 = scalar_lea.hbm %s1, %s168
          %s170 = sshll.u32 [#allocation6], 4
          %s171 = int_to_ptr.vmem [resolvable:$true] %s170
          %176 = dma.hbm_to_vmem [thread:$0]  %s169, 2048, %s171, [#allocation7], 128, 128, 8
        $region16: #{tpu_custom_call.1} parent=11 // pred_fallthru
          _
        // Predicated region
        $region17: #{tpu_custom_call.1} parent=11 // pred_check
          %p177 = pneg %p117
        $region18: #{tpu_custom_call.1} parent=11 // pred_check_branch
          %179 = sbr.rel (%p177) target = $region20
        $region19: #{tpu_custom_call.1} parent=11 // pred_region
          %p180 = scmp.lt.s32.totalorder %s27, 0
          %s181 = scalar_select %p180, %s27, 0
          %s182 = scalar_lea.vmem %s2, %s181
        $region20: #{tpu_custom_call.1} parent=11 // pred_fallthru
          _
      $region12: #{tpu_custom_call.1} parent=5 // pred_fallthru
        _
      %p183 = scmp.lt.s32.totalorder %s16, 2
      // Predicated region
      $region21: #{tpu_custom_call.1} parent=5 // pred_check
        %p184 = pneg %p183
      $region22: #{tpu_custom_call.1} parent=5 // pred_check_branch
        %186 = sbr.rel (%p184) target = $region24
      $region23: #{tpu_custom_call.1} parent=5 // pred_region
        // Predicated region
        $region25: #{tpu_custom_call.1} parent=23 // pred_check
          %p187 = pneg %p57
        $region26: #{tpu_custom_call.1} parent=23 // pred_check_branch
          %189 = sbr.rel (%p187) target = $region28
        $region27: #{tpu_custom_call.1} parent=23 // pred_region
          %s190 = sand.u32 %s47, 1
          %s191 = scalar_lea.sflag [#allocation4], %s190
          %s192 = sand.u32 %s47, 1
          %s193 = smul.addr %s192, 16
          %s194 = scalar_lea.vmem [#allocation3], %s193
          %s195 = smul.u32 2, %s23
          %s197 = ssub.s32 256, 256
          %198 = vsyncadd %s191, %s197
          %s199 = sadd.s32 %s25, %s195
          %s200 = smul.addr %s199, 128
          %s201 = scalar_lea.hbm %s0, %s200
          %s202 = sshll.u32 %s194, 4
          %s203 = int_to_ptr.vmem [resolvable:$true] %s202
          %208 = dma.hbm_to_vmem [thread:$0]  %s201, 256, %s203, %s191, 128, 128, 8
        $region28: #{tpu_custom_call.1} parent=23 // pred_fallthru
          _
      $region24: #{tpu_custom_call.1} parent=5 // pred_fallthru
        _
      %p209 = scmp.le.s32.totalorder 1, %s16
      %p210 = scmp.lt.s32.totalorder %s16, 3
      %p211 = pnand %p209, %p210
      %p212 = pneg %p211
      // Predicated region
      $region29: #{tpu_custom_call.1} parent=5 // pred_check
        _
      $region30: #{tpu_custom_call.1} parent=5 // pred_check_branch
        %214 = sbr.rel (%p211) target = $region32
      $region31: #{tpu_custom_call.1} parent=5 // pred_region
        %s215 = ssub.s32 %s16, 1
        %s216 = sand.u32 %s50, 1
        %s217 = scalar_lea.sflag [#allocation4], %s216
        %s218 = sand.u32 %s50, 1
        %s219 = smul.addr %s218, 16
        %s220 = scalar_lea.vmem [#allocation3], %s219
        // Predicated region
        $region33: #{tpu_custom_call.1} parent=31 // pred_check
          %p221 = pneg %p63
        $region34: #{tpu_custom_call.1} parent=31 // pred_check_branch
          %223 = sbr.rel (%p221) target = $region36
        $region35: #{tpu_custom_call.1} parent=31 // pred_region
          %224 = dma.done %s217, 256
        $region36: #{tpu_custom_call.1} parent=31 // pred_fallthru
          _
        // Predicated region
        $region37: #{tpu_custom_call.1} parent=31 // pred_check
          %p225 = pneg %p91
        $region38: #{tpu_custom_call.1} parent=31 // pred_check_branch
          %227 = sbr.rel (%p225) target = $region40
        $region39: #{tpu_custom_call.1} parent=31 // pred_region
          %228 = dma.done [#allocation7], 2048
        $region40: #{tpu_custom_call.1} parent=31 // pred_fallthru
          _
        %s229 = sand.u32 %s50, 1
        %s230 = scalar_lea.sflag [#allocation4], %s229
        %s231 = sand.u32 %s50, 1
        %s232 = smul.addr %s231, 16
        %s233 = scalar_lea.vmem [#allocation3], %s232
        %p234 = pneg %p63
        %p235 = pneg %p60
        %p236 = pneg %p91
        %p237 = pneg %p88
        %p238 = scmp.lt.s32.totalorder %s27, 0
        %s239 = scalar_select %p238, %s27, 0
        %s240 = scalar_lea.vmem %s2, %s239
        %p241 = pneg %p117
        %p242 = pneg %p114
        %p243 = pneg %p145
        %p244 = pneg %p142
        %s245 = sand.u32 %s132, 1
        %s246 = scalar_lea.sflag [#allocation5], %s245
        %s247 = sand.u32 %s132, 1
        %s248 = smul.addr %s247, 8
        %s249 = scalar_lea.vmem [#allocation8], %s248
        %s250 = smul.u32 2, %s26
        %s251 = smul.u32 16, %s28
        %p252 = scmp.lt.s32.totalorder %s27, 0
        %s253 = scalar_select %p252, %s27, 0
        %s254 = scalar_lea.vmem %s2, %s253
        %s255 = smul.u32 2, %s26
        %p256 = scmp.eq.s32.totalorder %s28, 0
        // Predicated region
        $region41: #{tpu_custom_call.1} parent=31 // pred_check
          %p257 = pneg %p256
        $region42: #{tpu_custom_call.1} parent=31 // pred_check_branch
          %259 = sbr.rel (%p257) target = $region44
        $region43: #{tpu_custom_call.1} parent=31 // pred_region
          %260 = vst [vmem:[#allocation2] sm:$0xff] 0.0
          %261 = vst [vmem:[#allocation2 + $0x8] sm:$0xff] 0.0
        $region44: #{tpu_custom_call.1} parent=31 // pred_fallthru
          _
        %v262 = vld [vmem:[#allocation2] sm:$0xff]
        %v263 = vld [vmem:[#allocation2 + $0x8] sm:$0xff]
        %v264 = vld [vmem:[%s220] sm:$0xff]
        %v265 = vld [vmem:[%s220 + $0x8] sm:$0xff]
        %v266 = vld [vmem:[#allocation6] sm:$0xff]
        %v267 = vld [vmem:[#allocation6 + $0x8] sm:$0xff]
        %v268 = vld [vmem:[#allocation6 + $0x10] sm:$0xff]
        %v269 = vld [vmem:[#allocation6 + $0x18] sm:$0xff]
        %v270 = vld [vmem:[#allocation6 + $0x20] sm:$0xff]
        %v271 = vld [vmem:[#allocation6 + $0x28] sm:$0xff]
        %v272 = vld [vmem:[#allocation6 + $0x30] sm:$0xff]
        %v273 = vld [vmem:[#allocation6 + $0x38] sm:$0xff]
        %v274 = vld [vmem:[#allocation6 + $0x40] sm:$0xff]
        %v275 = vld [vmem:[#allocation6 + $0x48] sm:$0xff]
        %v276 = vld [vmem:[#allocation6 + $0x50] sm:$0xff]
        %v277 = vld [vmem:[#allocation6 + $0x58] sm:$0xff]
        %v278 = vld [vmem:[#allocation6 + $0x60] sm:$0xff]
        %v279 = vld [vmem:[#allocation6 + $0x68] sm:$0xff]
        %v280 = vld [vmem:[#allocation6 + $0x70] sm:$0xff]
        %v281 = vld [vmem:[#allocation6 + $0x78] sm:$0xff]
        %282 = vmatprep.subr.mxu0 0.0
        %283 = vmatpush1.msra.mxu0 %v266
        %284 = vmatprep.subr.mxu0 0.0
        %285 = vmatpush1.msra.mxu0 %v267
        %286 = vmatprep.subr.mxu0 0.0
        %287 = vmatpush1.msra.mxu0 %v268
        %288 = vmatprep.subr.mxu0 0.0
        %289 = vmatpush1.msra.mxu0 %v269
        %290 = vmatprep.subr.mxu0 0.0
        %291 = vmatpush1.msra.mxu0 %v270
        %292 = vmatprep.subr.mxu0 0.0
        %293 = vmatpush1.msra.mxu0 %v271
        %294 = vmatprep.subr.mxu0 0.0
        %295 = vmatpush1.msra.mxu0 %v272
        %296 = vmatprep.subr.mxu0 0.0
        %297 = vmatpush1.msra.mxu0 %v273
        %298 = vmatprep.subr.mxu0 0.0
        %299 = vmatpush1.msra.mxu0 %v274
        %300 = vmatprep.subr.mxu0 0.0
        %301 = vmatpush1.msra.mxu0 %v275
        %302 = vmatprep.subr.mxu0 0.0
        %303 = vmatpush1.msra.mxu0 %v276
        %304 = vmatprep.subr.mxu0 0.0
        %305 = vmatpush1.msra.mxu0 %v277
        %306 = vmatprep.subr.mxu0 0.0
        %307 = vmatpush1.msra.mxu0 %v278
        %308 = vmatprep.subr.mxu0 0.0
        %309 = vmatpush1.msra.mxu0 %v279
        %310 = vmatprep.subr.mxu0 0.0
        %311 = vmatpush1.msra.mxu0 %v280
        %312 = vmatprep.subr.mxu0 0.0
        %313 = vmatpush1.msra.mxu0 %v281
        %314 = vmatprep.subr.mxu0 0.0
        %315 = vmatpush1.msra.mxu0 0.0
        %316 = vmatprep.subr.mxu0 0.0
        %317 = vmatpush1.msra.mxu0 0.0
        %318 = vmatprep.subr.mxu0 0.0
        %319 = vmatpush1.msra.mxu0 0.0
        %320 = vmatprep.subr.mxu0 0.0
        %321 = vmatpush1.msra.mxu0 0.0
        %322 = vmatprep.subr.mxu0 0.0
        %323 = vmatpush1.msra.mxu0 0.0
        %324 = vmatprep.subr.mxu0 0.0
        %325 = vmatpush1.msra.mxu0 0.0
        %326 = vmatprep.subr.mxu0 0.0
        %327 = vmatpush1.msra.mxu0 0.0
        %328 = vmatprep.subr.mxu0 0.0
        %329 = vmatpush1.msra.mxu0 0.0
        %330 = vmatprep.subr.mxu0 0.0
        %331 = vmatpush1.msra.mxu0 0.0
        %332 = vmatprep.subr.mxu0 0.0
        %333 = vmatpush1.msra.mxu0 0.0
        %334 = vmatprep.subr.mxu0 0.0
        %335 = vmatpush1.msra.mxu0 0.0
        %336 = vmatprep.subr.mxu0 0.0
        %337 = vmatpush1.msra.mxu0 0.0
        %338 = vmatprep.subr.mxu0 0.0
        %339 = vmatpush1.msra.mxu0 0.0
        %340 = vmatprep.subr.mxu0 0.0
        %341 = vmatpush1.msra.mxu0 0.0
        %342 = vmatprep.subr.mxu0 0.0
        %343 = vmatpush1.msra.mxu0 0.0
        %344 = vmatprep.subr.mxu0 0.0
        %345 = vmatpush1.msra.mxu0 0.0
        %346 = vmatprep.mubr.f32.mxu0 0.0
        %347 = vmatmul.mubr.f32.gmra.mrb[0].mxu0 %v264
        %v348 = vpop.f32.mrb[0].mxu0
        %v349 = vadd.f32 0.0, %v348
        %v350 = vpop.f32.mrb[0].mxu0
        %351 = vmatprep.mubr.f32.mxu0 0.0
        %352 = vmatmul.mubr.f32.gmra.mrb[0].mxu0 %v265
        %v353 = vpop.f32.mrb[0].mxu0
        %v354 = vadd.f32 0.0, %v353
        %v355 = vpop.f32.mrb[0].mxu0
        %356 = vdwg.mxu0
        %v357 = vadd.f32 %v262, %v349
        %v358 = vadd.f32 %v263, %v354
        %359 = vst [vmem:[#allocation2] sm:$0xff] %v357
        %360 = vst [vmem:[#allocation2 + $0x8] sm:$0xff] %v358
        // Predicated region
        $region45: #{tpu_custom_call.1} parent=31 // pred_check
          %p361 = pneg %p256
        $region46: #{tpu_custom_call.1} parent=31 // pred_check_branch
          %363 = sbr.rel (%p361) target = $region48
        $region47: #{tpu_custom_call.1} parent=31 // pred_region
          %v364 = vld [vmem:[#allocation2] sm:$0xff]
          %v365 = vld [vmem:[#allocation2 + $0x8] sm:$0xff]
          %v366 = vld [vmem:[%s254] sm:$0x1]
          %v368 = vlaneseq
          %v369 = vshrl.u32 %v368, 7
          %v370 = vsub.s32 0, %v369
          %v371 = vrot.slane %v366, %v370
          %v373 = vadd.f32 %v364, %v371
          %v374 = vadd.f32 %v365, %v371
          %v375 = vpack.c.bf16 %v374, %v373
          %v377 = vunpack.c.l.b16 %v375
          %v378 = vunpack.c.h.b16 %v375
          %v379 = vpack.c.b16 %v377, %v377
          %v380 = vpack.c.b16 %v378, %v378
          %383 = vst [vmem:[%s249] sm:$0xf] %v379
          %384 = vst [vmem:[%s249 + $0x4] sm:$0xf] %v380
        $region48: #{tpu_custom_call.1} parent=31 // pred_fallthru
          _
        %s385 = sand.u32 %s132, 1
        %s386 = scalar_lea.sflag [#allocation5], %s385
        %s387 = sand.u32 %s132, 1
        %s388 = smul.addr %s387, 8
        %s389 = scalar_lea.vmem [#allocation8], %s388
        // Predicated region
        $region49: #{tpu_custom_call.1} parent=31 // pred_check
          %p390 = pneg %p142
        $region50: #{tpu_custom_call.1} parent=31 // pred_check_branch
          %392 = sbr.rel (%p390) target = $region52
        $region51: #{tpu_custom_call.1} parent=31 // pred_region
          %s393 = smul.u32 2, %s26
          %s395 = ssub.s32 128, 128
          %396 = vsyncadd %s386, %s395
          %s397 = sadd.s32 %s27, %s393
          %s398 = smul.addr %s397, 64
          %s399 = scalar_lea.hbm %s3, %s398
          %s400 = sshll.u32 %s389, 4
          %s401 = int_to_ptr.vmem [resolvable:$true] %s400
          %406 = dma.vmem_to_hbm [thread:$0]  %s401, 128, %s399, %s386, 64, 64, 4
        $region52: #{tpu_custom_call.1} parent=31 // pred_fallthru
          _
      $region32: #{tpu_custom_call.1} parent=5 // pred_fallthru
        _
      %p407 = scmp.le.s32.totalorder 2, %s16
      // Predicated region
      $region53: #{tpu_custom_call.1} parent=5 // pred_check
        %p408 = pneg %p407
      $region54: #{tpu_custom_call.1} parent=5 // pred_check_branch
        %410 = sbr.rel (%p408) target = $region56
      $region55: #{tpu_custom_call.1} parent=5 // pred_region
        %s411 = ssub.s32 %s16, 2
        // Predicated region
        $region57: #{tpu_custom_call.1} parent=55 // pred_check
          %p412 = pneg %p148
        $region58: #{tpu_custom_call.1} parent=55 // pred_check_branch
          %414 = sbr.rel (%p412) target = $region60
        $region59: #{tpu_custom_call.1} parent=55 // pred_region
          %s415 = sand.u32 %s133, 1
          %s416 = scalar_lea.sflag [#allocation5], %s415
          %s417 = sand.u32 %s133, 1
          %s418 = smul.addr %s417, 8
          %s419 = scalar_lea.vmem [#allocation8], %s418
          %420 = dma.done %s416, 128
        $region60: #{tpu_custom_call.1} parent=55 // pred_fallthru
          _
      $region56: #{tpu_custom_call.1} parent=5 // pred_fallthru
        _
    $region6: #{tpu_custom_call.1} parent=1 // loop_footer
      %s20 = sadd.s32 1, %s16
    $region7: #{tpu_custom_call.1} parent=1 // loop_footer_branch
      %15 = sbr.rel target = $region3
    $region8: #{tpu_custom_call.1} parent=1 // loop_exit
      _
    %421 = vsyncpa [#allocation4], 1
    %s422 = scalar_lea.sflag [#allocation4], 1
    %423 = vsyncpa %s422, 1
    %424 = vsyncpa [#allocation7], 1
    %425 = vsyncpa [#allocation5], 1
    %s426 = scalar_lea.sflag [#allocation5], 1
    %427 = vsyncpa %s426, 1

</llo_original>
